<compile_context>
chip_gen: v6e
topology: v6e:2x2x1
jax: 0.10.0
libtpu: 0.0.40
codegen_flags: <defaults>
</compile_context>

<pallas_src>
import math

import jax
import jax.numpy as jnp
from jax.experimental import pallas as pl
from jax.experimental.pallas import tpu as pltpu

LANE = 128


def _round_up(x, m):
    return ((x + m - 1) // m) * m


def _cdiv(a, b):
    return -(-a // b)


def _vmem_capacity_bytes():
    try:
        return int(pltpu.get_tpu_info().vmem_capacity_bytes)
    except Exception:
        return 128 << 20  # v5e/v6e default


def _is_v5():
    try:
        return "v5" in jax.devices()[0].device_kind.lower()
    except Exception:
        return False


def make_generator_kernel(out_pads, act_dtype):
    """Fused MLP: ReLU(tanh(fc1 x)) -> [Linear -> ReLU]*H -> tanh(fc_out x)."""
    num_linear = len(out_pads)

    def kernel(x_ref, bias_ref, *rest):
        out_ref = rest[-1]
        w_refs = rest[:-1]
        h = x_ref[...]  # (TILE_B, in_pad) bf16 (pre-cast in wrapper)
        for i in range(num_linear):
            wo_p = out_pads[i]
            # bf16 x bf16 MXU matmul with f32 accumulation.
            acc = jnp.dot(h.astype(jnp.bfloat16), w_refs[i][...],
                          preferred_element_type=jnp.float32)
            acc = acc + bias_ref[i:i + 1, :wo_p]          # f32 bias add
            if i == 0:
                act = jnp.maximum(jnp.tanh(acc), 0.0)     # ReLU(tanh(fc1(x)))
            elif i == num_linear - 1:
                act = jnp.tanh(acc)                       # tanh(fc_output(x))
            else:
                act = jnp.maximum(acc, 0.0)               # hidden ReLU
            if i == num_linear - 1:
                out_ref[...] = act.astype(out_ref.dtype)
            else:
                h = act.astype(act_dtype)                 # bf16 carry (f32 on v5e)

    return kernel


def prepare_generator_params(params):
    """Pad + cast parameters ONCE (outside the per-call hot path).

    params: list of (W:(in,out) f32, b:(out,) f32).
    Returns dict with bf16 padded weights, packed f32 bias, and dims.
    """
    in_dim = params[0][0].shape[0]
    out_dims = [w.shape[1] for w, _ in params]
    in_pad = _round_up(in_dim, LANE)
    out_pads = [_round_up(d, LANE) for d in out_dims]
    dims_pad = [in_pad] + out_pads

    ws = []
    for li, (w, _) in enumerate(params):
        wi, wo = w.shape
        wp = jnp.zeros((dims_pad[li], out_pads[li]), jnp.bfloat16)
        wp = wp.at[:wi, :wo].set(w.astype(jnp.bfloat16))
        ws.append(wp)

    max_out = max(out_pads)
    bias = jnp.zeros((len(params), max_out), jnp.float32)
    for li, (_, b) in enumerate(params):
        bias = bias.at[li, : b.shape[0]].set(b)

    return dict(weights=ws, bias=bias, dims_pad=dims_pad,
                in_dim=in_dim, out_dim=out_dims[-1])


def generator_forward(x, prepared):
    """x: (batch, in) f32. prepared: output of prepare_generator_params."""
    ws = prepared["weights"]
    bias = prepared["bias"]
    dims_pad = prepared["dims_pad"]
    in_dim = prepared["in_dim"]
    out_dim = prepared["out_dim"]

    batch = x.shape[0]
    in_pad = dims_pad[0]
    out_pads = dims_pad[1:]
    out_pad = out_pads[-1]

    # --- generation-aware budgets -------------------------------------------
    vmem_cap = _vmem_capacity_bytes()
    budget = int(0.75 * vmem_cap)                 # ~48 MiB v7x, ~96 MiB v5e/v6e
    tile_max = 256 if vmem_cap <= (64 << 20) else 512

    # Balanced batch tiling: >= 2 grid steps (both TCs on v7x / megacore),
    # last tile nearly full (bounded ragged padding), multiple of 16 for bf16
    # sublane packing.
    num_tiles = max(2, _cdiv(batch, tile_max))
    tile_b = _round_up(_cdiv(batch, num_tiles), 16)

    param_bytes = (sum(int(w.size) for w in ws) * 2   # bf16, single-buffered
                   + int(bias.size) * 4)

    def vmem_need(tb):
        return (param_bytes                       # resident weights (Buffered(1))
                + 2 * tb * in_pad * 2             # double-buffered bf16 input tile
                + 2 * tb * out_pad * 4            # double-buffered f32 output tile
                + 4 * tb * max(dims_pad) * 4      # activation temporaries
                + (2 << 20))

    while vmem_need(tile_b) > budget and tile_b > 16:
        tile_b = max(16, _round_up(tile_b // 2, 16))

    num_tiles = max(2, _cdiv(batch, tile_b))
    b_pad = num_tiles * tile_b

    # Activation carry dtype: bf16 on v6e/v7x, f32 on v5e (no bf16 VPU/EUP).
    act_dtype = jnp.float32 if _is_v5() else jnp.bfloat16

    # Input padded and pre-cast to bf16 (halves per-tile input DMA).
    x_p = jnp.zeros((b_pad, in_pad), jnp.bfloat16)
    x_p = x_p.at[:batch, :in_dim].set(x.astype(jnp.bfloat16))

    # Weights/bias never change across batch tiles -> single-buffered resident.
    resident = pl.Buffered(buffer_count=1)
    in_specs = [
        pl.BlockSpec((tile_b, in_pad), lambda i: (i, 0)),
        pl.BlockSpec(bias.shape, lambda i: (0, 0), pipeline_mode=resident),
    ]
    for w in ws:
        in_specs.append(
            pl.BlockSpec(w.shape, lambda i: (0, 0), pipeline_mode=resident))
    out_specs = pl.BlockSpec((tile_b, out_pad), lambda i: (i, 0))

    # Advisory cost estimate + VMEM budget.
    flops = 2 * b_pad * sum(a * c for a, c in zip(dims_pad[:-1], dims_pad[1:]))
    transcendentals = b_pad * (dims_pad[1] + dims_pad[-1])
    bytes_accessed = int(x_p.size) * 2 + param_bytes + b_pad * out_pad * 4
    vmem_limit = int(min(budget, max(vmem_need(tile_b), 32 << 20)))

    out_padded = pl.pallas_call(
        make_generator_kernel(out_pads, act_dtype),
        out_shape=jax.ShapeDtypeStruct((b_pad, out_pad), jnp.float32),
        grid=(num_tiles,),
        in_specs=in_specs,
        out_specs=out_specs,
        compiler_params=pltpu.CompilerParams(
            dimension_semantics=("parallel",),
            vmem_limit_bytes=vmem_limit),
        cost_estimate=pl.CostEstimate(
            flops=int(flops),
            transcendentals=int(transcendentals),
            bytes_accessed=int(bytes_accessed)),
    )(x_p, bias, *ws)

    return out_padded[:batch, :out_dim]


def init_generator_params(key, input_size, hidden_size, output_size,
                          hidden_layers, reduction_factor=0.8):
    """Deterministic init mirroring PyTorch Linear default U(-1/sqrt(in), 1/sqrt(in))."""
    sizes = [(input_size, hidden_size)]
    current = hidden_size
    for _ in range(hidden_layers):
        nxt = int(current * reduction_factor)
        sizes.append((current, nxt))
        current = nxt
    sizes.append((current, output_size))

    params = []
    for fan_in, fan_out in sizes:
        key, kw, kb = jax.random.split(key, 3)
        bound = 1.0 / math.sqrt(fan_in)
        w = jax.random.uniform(kw, (fan_in, fan_out), jnp.float32, -bound, bound)
        b = jax.random.uniform(kb, (fan_out,), jnp.float32, -bound, bound)
        params.append((w, b))
    return params


def reference_forward(x, params):
    """Pure-JAX reference with the same bf16-weight / f32-accumulation numerics."""
    h = x
    n = len(params)
    for i, (w, b) in enumerate(params):
        h = jnp.dot(h.astype(jnp.bfloat16), w.astype(jnp.bfloat16),
                    preferred_element_type=jnp.float32) + b
        if i == 0:
            h = jnp.maximum(jnp.tanh(h), 0.0)
        elif i == n - 1:
            h = jnp.tanh(h)
        else:
            h = jnp.maximum(h, 0.0)
    return h


if __name__ == "__main__":
    key = jax.random.PRNGKey(0)
    kx, kp = jax.random.split(key)

    # small shapes consistent with the module's forward
    batch, input_size, hidden_size, output_size, hidden_layers = 4, 16, 32, 8, 2
    # hidden chain: 32 -> int(32*0.8)=25 -> int(25*0.8)=20 -> 8

    x = jax.random.normal(kx, (batch, input_size), dtype=jnp.float32)
    params = init_generator_params(kp, input_size, hidden_size, output_size,
                                   hidden_layers, reduction_factor=0.8)

    prepared = prepare_generator_params(params)   # pad/cast once, outside hot path
    out = generator_forward(x, prepared)
    out = jax.block_until_ready(out)

    ref = reference_forward(x, params)
    assert out.shape == (batch, output_size), out.shape
    max_err = float(jnp.max(jnp.abs(out - ref)))
    assert jnp.allclose(out, ref, atol=5e-3, rtol=5e-3), (
        f"mismatch vs reference: max abs diff {max_err}")

    print("KERNEL_OK")
</pallas_src>

<mosaic_0001>
module attributes {stable_mosaic.version = 11 : i64} {
  func.func @kernel(%arg0: i32, %arg1: memref<16x128xbf16, #tpu.memory_space<vmem>>, %arg2: memref<4x128xf32, #tpu.memory_space<vmem>>, %arg3: memref<128x128xbf16, #tpu.memory_space<vmem>>, %arg4: memref<128x128xbf16, #tpu.memory_space<vmem>>, %arg5: memref<128x128xbf16, #tpu.memory_space<vmem>>, %arg6: memref<128x128xbf16, #tpu.memory_space<vmem>>, %arg7: memref<16x128xf32, #tpu.memory_space<vmem>>) attributes {dimension_semantics = [#tpu.dimension_semantics<parallel>], iteration_bounds = array<i64: 2>, scalar_prefetch = 0 : i64, scratch_operands = 0 : i64, tpu.core_type = #tpu.core_type<tc>, window_params = [{transform_indices = @transform_0, window_bounds = array<i64: 16, 128>}, {pipeline_mode = #tpu.pipeline_mode<synchronous>, transform_indices = @transform_1, window_bounds = array<i64: 4, 128>}, {pipeline_mode = #tpu.pipeline_mode<synchronous>, transform_indices = @transform_2, window_bounds = array<i64: 128, 128>}, {pipeline_mode = #tpu.pipeline_mode<synchronous>, transform_indices = @transform_3, window_bounds = array<i64: 128, 128>}, {pipeline_mode = #tpu.pipeline_mode<synchronous>, transform_indices = @transform_4, window_bounds = array<i64: 128, 128>}, {pipeline_mode = #tpu.pipeline_mode<synchronous>, transform_indices = @transform_5, window_bounds = array<i64: 128, 128>}, {transform_indices = @transform_6, window_bounds = array<i64: 16, 128>}]} {
    %c0 = arith.constant 0 : index
    %c0_0 = arith.constant 0 : index
    %0 = vector.load %arg1[%c0, %c0_0] : memref<16x128xbf16, #tpu.memory_space<vmem>>, vector<16x128xbf16>
    %c0_1 = arith.constant 0 : index
    %c0_2 = arith.constant 0 : index
    %1 = vector.load %arg3[%c0_1, %c0_2] : memref<128x128xbf16, #tpu.memory_space<vmem>>, vector<128x128xbf16>
    %cst = arith.constant dense<0.000000e+00> : vector<16x128xf32>
    %2 = tpu.matmul %0, %1, %cst {dimension_numbers = #tpu.dot_dimension_numbers<[1], [0], [0], [1], [0, 0, 1, 1], [], []>} : vector<16x128xbf16>, vector<128x128xbf16>, vector<16x128xf32> -> vector<16x128xf32>
    %c0_3 = arith.constant 0 : index
    %c0_4 = arith.constant 0 : index
    %3 = vector.load %arg2[%c0_3, %c0_4] : memref<4x128xf32, #tpu.memory_space<vmem>>, vector<1x128xf32>
    %4 = vector.broadcast %3 : vector<1x128xf32> to vector<16x128xf32>
    %5 = arith.addf %2, %4 : vector<16x128xf32>
    %6 = math.tanh %5 : vector<16x128xf32>
    %cst_5 = arith.constant 0.000000e+00 : f32
    %7 = vector.broadcast %cst_5 : f32 to vector<16x128xf32>
    %8 = arith.maximumf %6, %7 : vector<16x128xf32>
    %9 = arith.truncf %8 : vector<16x128xf32> to vector<16x128xbf16>
    %c0_6 = arith.constant 0 : index
    %c0_7 = arith.constant 0 : index
    %10 = vector.load %arg4[%c0_6, %c0_7] : memref<128x128xbf16, #tpu.memory_space<vmem>>, vector<128x128xbf16>
    %cst_8 = arith.constant dense<0.000000e+00> : vector<16x128xf32>
    %11 = tpu.matmul %9, %10, %cst_8 {dimension_numbers = #tpu.dot_dimension_numbers<[1], [0], [0], [1], [0, 0, 1, 1], [], []>} : vector<16x128xbf16>, vector<128x128xbf16>, vector<16x128xf32> -> vector<16x128xf32>
    %c1 = arith.constant 1 : index
    %c0_9 = arith.constant 0 : index
    %12 = vector.load %arg2[%c1, %c0_9] : memref<4x128xf32, #tpu.memory_space<vmem>>, vector<1x128xf32>
    %13 = vector.broadcast %12 : vector<1x128xf32> to vector<16x128xf32>
    %14 = arith.addf %11, %13 : vector<16x128xf32>
    %cst_10 = arith.constant 0.000000e+00 : f32
    %15 = vector.broadcast %cst_10 : f32 to vector<16x128xf32>
    %16 = arith.maximumf %14, %15 : vector<16x128xf32>
    %17 = arith.truncf %16 : vector<16x128xf32> to vector<16x128xbf16>
    %c0_11 = arith.constant 0 : index
    %c0_12 = arith.constant 0 : index
    %18 = vector.load %arg5[%c0_11, %c0_12] : memref<128x128xbf16, #tpu.memory_space<vmem>>, vector<128x128xbf16>
    %cst_13 = arith.constant dense<0.000000e+00> : vector<16x128xf32>
    %19 = tpu.matmul %17, %18, %cst_13 {dimension_numbers = #tpu.dot_dimension_numbers<[1], [0], [0], [1], [0, 0, 1, 1], [], []>} : vector<16x128xbf16>, vector<128x128xbf16>, vector<16x128xf32> -> vector<16x128xf32>
    %c2 = arith.constant 2 : index
    %c0_14 = arith.constant 0 : index
    %20 = vector.load %arg2[%c2, %c0_14] : memref<4x128xf32, #tpu.memory_space<vmem>>, vector<1x128xf32>
    %21 = vector.broadcast %20 : vector<1x128xf32> to vector<16x128xf32>
    %22 = arith.addf %19, %21 : vector<16x128xf32>
    %cst_15 = arith.constant 0.000000e+00 : f32
    %23 = vector.broadcast %cst_15 : f32 to vector<16x128xf32>
    %24 = arith.maximumf %22, %23 : vector<16x128xf32>
    %25 = arith.truncf %24 : vector<16x128xf32> to vector<16x128xbf16>
    %c0_16 = arith.constant 0 : index
    %c0_17 = arith.constant 0 : index
    %26 = vector.load %arg6[%c0_16, %c0_17] : memref<128x128xbf16, #tpu.memory_space<vmem>>, vector<128x128xbf16>
    %cst_18 = arith.constant dense<0.000000e+00> : vector<16x128xf32>
    %27 = tpu.matmul %25, %26, %cst_18 {dimension_numbers = #tpu.dot_dimension_numbers<[1], [0], [0], [1], [0, 0, 1, 1], [], []>} : vector<16x128xbf16>, vector<128x128xbf16>, vector<16x128xf32> -> vector<16x128xf32>
    %c3 = arith.constant 3 : index
    %c0_19 = arith.constant 0 : index
    %28 = vector.load %arg2[%c3, %c0_19] : memref<4x128xf32, #tpu.memory_space<vmem>>, vector<1x128xf32>
    %29 = vector.broadcast %28 : vector<1x128xf32> to vector<16x128xf32>
    %30 = arith.addf %27, %29 : vector<16x128xf32>
    %31 = math.tanh %30 : vector<16x128xf32>
    %c0_20 = arith.constant 0 : index
    %c0_21 = arith.constant 0 : index
    %32 = vector.load %arg7[%c0_20, %c0_21] : memref<16x128xf32, #tpu.memory_space<vmem>>, vector<16x128xf32>
    tpu.vector_store %arg7[%c0_20, %c0_21], %31 {strides = array<i32>} : memref<16x128xf32, #tpu.memory_space<vmem>>, vector<16x128xf32>,
    return
  }
  func.func @transform_0(%arg0: i32) -> (i32, i32) {
    %c0_i32 = arith.constant 0 : i32
    %c0_i32_0 = arith.constant 0 : i32
    return %arg0, %c0_i32 : i32, i32
  }
  func.func @transform_1(%arg0: i32) -> (i32, i32) {
    %c0_i32 = arith.constant 0 : i32
    %c0_i32_0 = arith.constant 0 : i32
    %c0_i32_1 = arith.constant 0 : i32
    return %c0_i32, %c0_i32_0 : i32, i32
  }
  func.func @transform_2(%arg0: i32) -> (i32, i32) {
    %c0_i32 = arith.constant 0 : i32
    %c0_i32_0 = arith.constant 0 : i32
    %c0_i32_1 = arith.constant 0 : i32
    return %c0_i32, %c0_i32_0 : i32, i32
  }
  func.func @transform_3(%arg0: i32) -> (i32, i32) {
    %c0_i32 = arith.constant 0 : i32
    %c0_i32_0 = arith.constant 0 : i32
    %c0_i32_1 = arith.constant 0 : i32
    return %c0_i32, %c0_i32_0 : i32, i32
  }
  func.func @transform_4(%arg0: i32) -> (i32, i32) {
    %c0_i32 = arith.constant 0 : i32
    %c0_i32_0 = arith.constant 0 : i32
    %c0_i32_1 = arith.constant 0 : i32
    return %c0_i32, %c0_i32_0 : i32, i32
  }
  func.func @transform_5(%arg0: i32) -> (i32, i32) {
    %c0_i32 = arith.constant 0 : i32
    %c0_i32_0 = arith.constant 0 : i32
    %c0_i32_1 = arith.constant 0 : i32
    return %c0_i32, %c0_i32_0 : i32, i32
  }
  func.func @transform_6(%arg0: i32) -> (i32, i32) {
    %c0_i32 = arith.constant 0 : i32
    %c0_i32_0 = arith.constant 0 : i32
    return %arg0, %c0_i32 : i32, i32
  }
}

</mosaic_0001>

<llo_original>
// kernel: tpu_custom_call.1
$region0: #{tpu_custom_call.1}
  #allocation0 [shape = 'u32[]', space=smem, size = 0x4, offset = 0x4, fixed_abs, tag = 'smem constant byte address 0x4 - core index']
  #allocation1 [shape = 'u32[144,128]{1,0:T(1,128)}', space=vmem, size = 0x12000, scoped, tag = 'internal scratch']
  %s0 = inlined_call_operand.hbm [shape: bf16[32,128], index: 0, kind: input, shape index: {}]
  %s1 = inlined_call_operand.hbm [shape: f32[4,128], index: 1, kind: input, shape index: {}]
  %s2 = inlined_call_operand.hbm [shape: bf16[128,128], index: 2, kind: input, shape index: {}]
  %s3 = inlined_call_operand.hbm [shape: bf16[128,128], index: 3, kind: input, shape index: {}]
  %s4 = inlined_call_operand.hbm [shape: bf16[128,128], index: 4, kind: input, shape index: {}]
  %s5 = inlined_call_operand.hbm [shape: bf16[128,128], index: 5, kind: input, shape index: {}]
  %s6 = inlined_call_operand.hbm [shape: f32[32,128], index: 6, kind: output, shape index: {}]
  %s7 = sld [smem:[#allocation0]]
  $region81: #{tpu_custom_call.1} parent=0
    _
  %s9 = ssub.s32 1, %s7
  %s10 = scalar_select 0, %s9, %s7
  $region1: #{tpu_custom_call.1} parent=0
    #allocation2 [shape = 'u8[8192]{0}', space=vmem, size = 0x2000, scoped, tag = 'input window, operand 0']
    #allocation3 [shape = 's32[2]{0}', space=sflag, size = 0x8, scoped, tag = 'scoped memory for tpu_custom_call.1']
    #allocation4 [shape = 's32[2]{0}', space=sflag, size = 0x8, scoped, tag = 'scoped memory for tpu_custom_call.1']
    #allocation5 [shape = 'u8[2048]{0}', space=vmem, size = 0x800, scoped, tag = 'input window, operand 1, single buffered']
    #allocation6 [shape = 's32[1]{0}', space=sflag, size = 0x4, scoped, tag = 'scoped memory for tpu_custom_call.1']
    #allocation7 [shape = 'u8[32768]{0}', space=vmem, size = 0x8000, scoped, tag = 'input window, operand 2, single buffered']
    #allocation8 [shape = 'u8[32768]{0}', space=vmem, size = 0x8000, scoped, tag = 'input window, operand 3, single buffered']
    #allocation9 [shape = 's32[1]{0}', space=sflag, size = 0x4, scoped, tag = 'scoped memory for tpu_custom_call.1']
    #allocation10 [shape = 'u8[32768]{0}', space=vmem, size = 0x8000, scoped, tag = 'input window, operand 4, single buffered']
    #allocation11 [shape = 'u8[32768]{0}', space=vmem, size = 0x8000, scoped, tag = 'input window, operand 5, single buffered']
    #allocation12 [shape = 's32[1]{0}', space=sflag, size = 0x4, scoped, tag = 'scoped memory for tpu_custom_call.1']
    #allocation13 [shape = 'u8[16384]{0}', space=vmem, size = 0x4000, scoped, tag = 'output window, operand 0']
    %11 = vsyncpa [#allocation3], 0
    %s12 = scalar_lea.sflag [#allocation3], 1
    %13 = vsyncpa %s12, 0
    %14 = vsyncpa [#allocation6], 0
    %15 = vsyncpa [#allocation9], 0
    %16 = vsyncpa [#allocation12], 0
    %17 = vsyncpa [#allocation4], 0
    %s18 = scalar_lea.sflag [#allocation4], 1
    %19 = vsyncpa %s18, 0
    loop: start=0, step=1, limit=4
    $region2: #{tpu_custom_call.1} parent=1 // loop_pre_header
      _
    $region3: #{tpu_custom_call.1} parent=1 // loop_header
      %s21 = sphi 0, %s25
      %p22 = scmp.ge.s32.totalorder %s21, 4
      %s31 = sphi 0, %s33
      %s34 = sphi 0, %s31
      %s35 = sphi 0, %s34
      %s51 = sphi 0, %s35
      %s55 = sphi 0, %s55
      %s57 = sphi 0, %s55
      %s58 = sphi 0, %s57
      %s72 = sphi 0, %s58
      %s76 = sphi 0, %s76
      %s78 = sphi 0, %s76
      %s79 = sphi 0, %s78
      %s93 = sphi 0, %s79
      %s97 = sphi 0, %s97
      %s99 = sphi 0, %s97
      %s100 = sphi 0, %s99
      %s114 = sphi 0, %s100
      %s118 = sphi 0, %s118
      %s120 = sphi 0, %s118
      %s121 = sphi 0, %s120
      %s135 = sphi 0, %s121
      %s139 = sphi 0, %s139
      %s141 = sphi 0, %s139
      %s142 = sphi 0, %s141
      %s156 = sphi 0, %s142
      %s162 = sphi 0, %s164
      %s165 = sphi 0, %s162
      %s166 = sphi 0, %s165
      %s182 = sphi 0, %s166
    $region4: #{tpu_custom_call.1} parent=1 // loop_header_branch
      %24 = sbr.rel (%p22) target = $region8
    $region5: #{tpu_custom_call.1} parent=1 // loop_body
      %s26 = ssub.s32 %s21, 1
      %s27 = ssub.s32 %s21, 2
      %s28 = sadd.s32 %s21, 1
      %s29 = ssub.s32 %s21, %s28
      %p30 = scmp.eq.s32.totalorder %s29, 0
      %s32 = sadd.s32 %s31, 1
      %s33 = scalar_select %p30, %s31, %s32
      %p36 = pneg %p30
      %p37 = scmp.eq.s32.totalorder %s21, 1
      %p38 = por %p36, %p37
      %p39 = scmp.ne.s32.totalorder %s31, %s34
      %p40 = scmp.eq.s32.totalorder %s21, 0
      %p41 = por %p39, %p40
      %p42 = scmp.ne.s32.totalorder %s31, %s34
      %p43 = scmp.eq.s32.totalorder %s26, 1
      %p44 = por %p42, %p43
      %p45 = scmp.ne.s32.totalorder %s34, %s35
      %p46 = scmp.eq.s32.totalorder %s26, 0
      %p47 = por %p45, %p46
      %p48 = scmp.ne.s32.totalorder %s34, %s35
      %p49 = scmp.eq.s32.totalorder %s27, 1
      %p50 = por %p48, %p49
      %p52 = scmp.ne.s32.totalorder %s35, %s51
      %p53 = scmp.eq.s32.totalorder %s27, 0
      %p54 = por %p52, %p53
      %s56 = sadd.s32 %s55, 1
      %p59 = scmp.eq.s32.totalorder %s21, 1
      %p60 = scmp.ne.s32.totalorder %s55, %s57
      %p61 = scmp.eq.s32.totalorder %s21, 0
      %p62 = por %p60, %p61
      %p63 = scmp.ne.s32.totalorder %s55, %s57
      %p64 = scmp.eq.s32.totalorder %s26, 1
      %p65 = por %p63, %p64
      %p66 = scmp.ne.s32.totalorder %s57, %s58
      %p67 = scmp.eq.s32.totalorder %s26, 0
      %p68 = por %p66, %p67
      %p69 = scmp.ne.s32.totalorder %s57, %s58
      %p70 = scmp.eq.s32.totalorder %s27, 1
      %p71 = por %p69, %p70
      %p73 = scmp.ne.s32.totalorder %s58, %s72
      %p74 = scmp.eq.s32.totalorder %s27, 0
      %p75 = por %p73, %p74
      %s77 = sadd.s32 %s76, 1
      %p80 = scmp.eq.s32.totalorder %s21, 1
      %p81 = scmp.ne.s32.totalorder %s76, %s78
      %p82 = scmp.eq.s32.totalorder %s21, 0
      %p83 = por %p81, %p82
      %p84 = scmp.ne.s32.totalorder %s76, %s78
      %p85 = scmp.eq.s32.totalorder %s26, 1
      %p86 = por %p84, %p85
      %p87 = scmp.ne.s32.totalorder %s78, %s79
      %p88 = scmp.eq.s32.totalorder %s26, 0
      %p89 = por %p87, %p88
      %p90 = scmp.ne.s32.totalorder %s78, %s79
      %p91 = scmp.eq.s32.totalorder %s27, 1
      %p92 = por %p90, %p91
      %p94 = scmp.ne.s32.totalorder %s79, %s93
      %p95 = scmp.eq.s32.totalorder %s27, 0
      %p96 = por %p94, %p95
      %s98 = sadd.s32 %s97, 1
      %p101 = scmp.eq.s32.totalorder %s21, 1
      %p102 = scmp.ne.s32.totalorder %s97, %s99
      %p103 = scmp.eq.s32.totalorder %s21, 0
      %p104 = por %p102, %p103
      %p105 = scmp.ne.s32.totalorder %s97, %s99
      %p106 = scmp.eq.s32.totalorder %s26, 1
      %p107 = por %p105, %p106
      %p108 = scmp.ne.s32.totalorder %s99, %s100
      %p109 = scmp.eq.s32.totalorder %s26, 0
      %p110 = por %p108, %p109
      %p111 = scmp.ne.s32.totalorder %s99, %s100
      %p112 = scmp.eq.s32.totalorder %s27, 1
      %p113 = por %p111, %p112
      %p115 = scmp.ne.s32.totalorder %s100, %s114
      %p116 = scmp.eq.s32.totalorder %s27, 0
      %p117 = por %p115, %p116
      %s119 = sadd.s32 %s118, 1
      %p122 = scmp.eq.s32.totalorder %s21, 1
      %p123 = scmp.ne.s32.totalorder %s118, %s120
      %p124 = scmp.eq.s32.totalorder %s21, 0
      %p125 = por %p123, %p124
      %p126 = scmp.ne.s32.totalorder %s118, %s120
      %p127 = scmp.eq.s32.totalorder %s26, 1
      %p128 = por %p126, %p127
      %p129 = scmp.ne.s32.totalorder %s120, %s121
      %p130 = scmp.eq.s32.totalorder %s26, 0
      %p131 = por %p129, %p130
      %p132 = scmp.ne.s32.totalorder %s120, %s121
      %p133 = scmp.eq.s32.totalorder %s27, 1
      %p134 = por %p132, %p133
      %p136 = scmp.ne.s32.totalorder %s121, %s135
      %p137 = scmp.eq.s32.totalorder %s27, 0
      %p138 = por %p136, %p137
      %s140 = sadd.s32 %s139, 1
      %p143 = scmp.eq.s32.totalorder %s21, 1
      %p144 = scmp.ne.s32.totalorder %s139, %s141
      %p145 = scmp.eq.s32.totalorder %s21, 0
      %p146 = por %p144, %p145
      %p147 = scmp.ne.s32.totalorder %s139, %s141
      %p148 = scmp.eq.s32.totalorder %s26, 1
      %p149 = por %p147, %p148
      %p150 = scmp.ne.s32.totalorder %s141, %s142
      %p151 = scmp.eq.s32.totalorder %s26, 0
      %p152 = por %p150, %p151
      %p153 = scmp.ne.s32.totalorder %s141, %s142
      %p154 = scmp.eq.s32.totalorder %s27, 1
      %p155 = por %p153, %p154
      %p157 = scmp.ne.s32.totalorder %s142, %s156
      %p158 = scmp.eq.s32.totalorder %s27, 0
      %p159 = por %p157, %p158
      %s160 = ssub.s32 %s21, %s28
      %p161 = scmp.eq.s32.totalorder %s160, 0
      %s163 = sadd.s32 %s162, 1
      %s164 = scalar_select %p161, %s162, %s163
      %p167 = pneg %p161
      %p168 = scmp.eq.s32.totalorder %s21, 1
      %p169 = por %p167, %p168
      %p170 = scmp.ne.s32.totalorder %s162, %s165
      %p171 = scmp.eq.s32.totalorder %s21, 0
      %p172 = por %p170, %p171
      %p173 = scmp.ne.s32.totalorder %s162, %s165
      %p174 = scmp.eq.s32.totalorder %s26, 1
      %p175 = por %p173, %p174
      %p176 = scmp.ne.s32.totalorder %s165, %s166
      %p177 = scmp.eq.s32.totalorder %s26, 0
      %p178 = por %p176, %p177
      %p179 = scmp.ne.s32.totalorder %s165, %s166
      %p180 = scmp.eq.s32.totalorder %s27, 1
      %p181 = por %p179, %p180
      %p183 = scmp.ne.s32.totalorder %s166, %s182
      %p184 = scmp.eq.s32.totalorder %s27, 0
      %p185 = por %p183, %p184
      %p186 = scmp.le.s32.totalorder 1, %s21
      %p187 = scmp.lt.s32.totalorder %s21, 3
      %p188 = pnand %p186, %p187
      %p189 = pneg %p188
      // Predicated region
      $region9: #{tpu_custom_call.1} parent=5 // pred_check
        _
      $region10: #{tpu_custom_call.1} parent=5 // pred_check_branch
        %191 = sbr.rel (%p188) target = $region12
      $region11: #{tpu_custom_call.1} parent=5 // pred_region
        %s192 = ssub.s32 %s21, 1
        // Predicated region
        $region13: #{tpu_custom_call.1} parent=11 // pred_check
          %p193 = pneg %p68
        $region14: #{tpu_custom_call.1} parent=11 // pred_check_branch
          %195 = sbr.rel (%p193) target = $region16
        $region15: #{tpu_custom_call.1} parent=11 // pred_region
          %s197 = ssub.s32 64, 64
          %198 = vsyncadd [#allocation6], %s197
          %s200 = sshll.u32 [#allocation5], 4
          %s201 = int_to_ptr.vmem [resolvable:$true] %s200
          %203 = dma.hbm_to_vmem [thread:$0]  %s1, 64, %s201, [#allocation6]
        $region16: #{tpu_custom_call.1} parent=11 // pred_fallthru
          _
        // Predicated region
        $region17: #{tpu_custom_call.1} parent=11 // pred_check
          %p204 = pneg %p89
        $region18: #{tpu_custom_call.1} parent=11 // pred_check_branch
          %206 = sbr.rel (%p204) target = $region20
        $region19: #{tpu_custom_call.1} parent=11 // pred_region
          %s208 = ssub.s32 1024, 1024
          %209 = vsyncadd [#allocation6], %s208
          %s210 = sshll.u32 [#allocation7], 4
          %s211 = int_to_ptr.vmem [resolvable:$true] %s210
          %216 = dma.hbm_to_vmem [thread:$0]  %s2, 1024, %s211, [#allocation6], 64, 64, 4
        $region20: #{tpu_custom_call.1} parent=11 // pred_fallthru
          _
        // Predicated region
        $region21: #{tpu_custom_call.1} parent=11 // pred_check
          %p217 = pneg %p110
        $region22: #{tpu_custom_call.1} parent=11 // pred_check_branch
          %219 = sbr.rel (%p217) target = $region24
        $region23: #{tpu_custom_call.1} parent=11 // pred_region
          %s221 = ssub.s32 1024, 1024
          %222 = vsyncadd [#allocation9], %s221
          %s223 = sshll.u32 [#allocation8], 4
          %s224 = int_to_ptr.vmem [resolvable:$true] %s223
          %229 = dma.hbm_to_vmem [thread:$0]  %s3, 1024, %s224, [#allocation9], 64, 64, 4
        $region24: #{tpu_custom_call.1} parent=11 // pred_fallthru
          _
        // Predicated region
        $region25: #{tpu_custom_call.1} parent=11 // pred_check
          %p230 = pneg %p131
        $region26: #{tpu_custom_call.1} parent=11 // pred_check_branch
          %232 = sbr.rel (%p230) target = $region28
        $region27: #{tpu_custom_call.1} parent=11 // pred_region
          %s234 = ssub.s32 1024, 1024
          %235 = vsyncadd [#allocation9], %s234
          %s236 = sshll.u32 [#allocation10], 4
          %s237 = int_to_ptr.vmem [resolvable:$true] %s236
          %242 = dma.hbm_to_vmem [thread:$0]  %s4, 1024, %s237, [#allocation9], 64, 64, 4
        $region28: #{tpu_custom_call.1} parent=11 // pred_fallthru
          _
        // Predicated region
        $region29: #{tpu_custom_call.1} parent=11 // pred_check
          %p243 = pneg %p152
        $region30: #{tpu_custom_call.1} parent=11 // pred_check_branch
          %245 = sbr.rel (%p243) target = $region32
        $region31: #{tpu_custom_call.1} parent=11 // pred_region
          %s247 = ssub.s32 1024, 1024
          %248 = vsyncadd [#allocation12], %s247
          %s249 = sshll.u32 [#allocation11], 4
          %s250 = int_to_ptr.vmem [resolvable:$true] %s249
          %255 = dma.hbm_to_vmem [thread:$0]  %s5, 1024, %s250, [#allocation12], 64, 64, 4
        $region32: #{tpu_custom_call.1} parent=11 // pred_fallthru
          _
      $region12: #{tpu_custom_call.1} parent=5 // pred_fallthru
        _
      %p256 = scmp.lt.s32.totalorder %s21, 2
      // Predicated region
      $region33: #{tpu_custom_call.1} parent=5 // pred_check
        %p257 = pneg %p256
      $region34: #{tpu_custom_call.1} parent=5 // pred_check_branch
        %259 = sbr.rel (%p257) target = $region36
      $region35: #{tpu_custom_call.1} parent=5 // pred_region
        // Predicated region
        $region37: #{tpu_custom_call.1} parent=35 // pred_check
          %p260 = pneg %p41
        $region38: #{tpu_custom_call.1} parent=35 // pred_check_branch
          %262 = sbr.rel (%p260) target = $region40
        $region39: #{tpu_custom_call.1} parent=35 // pred_region
          %s263 = sand.u32 %s31, 1
          %s264 = scalar_lea.sflag [#allocation3], %s263
          %s265 = sand.u32 %s31, 1
          %s266 = smul.addr %s265, 8
          %s267 = scalar_lea.vmem [#allocation2], %s266
          %s268 = smul.u32 2, %s21
          %s270 = ssub.s32 128, 128
          %271 = vsyncadd %s264, %s270
          %s272 = smul.addr %s268, 64
          %s273 = scalar_lea.hbm %s0, %s272
          %s274 = sshll.u32 %s267, 4
          %s275 = int_to_ptr.vmem [resolvable:$true] %s274
          %280 = dma.hbm_to_vmem [thread:$0]  %s273, 128, %s275, %s264, 64, 64, 4
        $region40: #{tpu_custom_call.1} parent=35 // pred_fallthru
          _
      $region36: #{tpu_custom_call.1} parent=5 // pred_fallthru
        _
      %p281 = scmp.le.s32.totalorder 1, %s21
      %p282 = scmp.lt.s32.totalorder %s21, 3
      %p283 = pnand %p281, %p282
      %p284 = pneg %p283
      // Predicated region
      $region41: #{tpu_custom_call.1} parent=5 // pred_check
        _
      $region42: #{tpu_custom_call.1} parent=5 // pred_check_branch
        %286 = sbr.rel (%p283) target = $region44
      $region43: #{tpu_custom_call.1} parent=5 // pred_region
        %s287 = ssub.s32 %s21, 1
        %s288 = sand.u32 %s34, 1
        %s289 = scalar_lea.sflag [#allocation3], %s288
        %s290 = sand.u32 %s34, 1
        %s291 = smul.addr %s290, 8
        %s292 = scalar_lea.vmem [#allocation2], %s291
        // Predicated region
        $region45: #{tpu_custom_call.1} parent=43 // pred_check
          %p293 = pneg %p47
        $region46: #{tpu_custom_call.1} parent=43 // pred_check_branch
          %295 = sbr.rel (%p293) target = $region48
        $region47: #{tpu_custom_call.1} parent=43 // pred_region
          %296 = dma.done %s289, 128
        $region48: #{tpu_custom_call.1} parent=43 // pred_fallthru
          _
        // Predicated region
        $region49: #{tpu_custom_call.1} parent=43 // pred_check
          %p297 = pneg %p68
        $region50: #{tpu_custom_call.1} parent=43 // pred_check_branch
          %299 = sbr.rel (%p297) target = $region52
        $region51: #{tpu_custom_call.1} parent=43 // pred_region
          %300 = dma.done [#allocation6], 64
        $region52: #{tpu_custom_call.1} parent=43 // pred_fallthru
          _
        // Predicated region
        $region53: #{tpu_custom_call.1} parent=43 // pred_check
          %p301 = pneg %p89
        $region54: #{tpu_custom_call.1} parent=43 // pred_check_branch
          %303 = sbr.rel (%p301) target = $region56
        $region55: #{tpu_custom_call.1} parent=43 // pred_region
          %304 = dma.done [#allocation6], 1024
        $region56: #{tpu_custom_call.1} parent=43 // pred_fallthru
          _
        // Predicated region
        $region57: #{tpu_custom_call.1} parent=43 // pred_check
          %p305 = pneg %p110
        $region58: #{tpu_custom_call.1} parent=43 // pred_check_branch
          %307 = sbr.rel (%p305) target = $region60
        $region59: #{tpu_custom_call.1} parent=43 // pred_region
          %308 = dma.done [#allocation9], 1024
        $region60: #{tpu_custom_call.1} parent=43 // pred_fallthru
          _
        // Predicated region
        $region61: #{tpu_custom_call.1} parent=43 // pred_check
          %p309 = pneg %p131
        $region62: #{tpu_custom_call.1} parent=43 // pred_check_branch
          %311 = sbr.rel (%p309) target = $region64
        $region63: #{tpu_custom_call.1} parent=43 // pred_region
          %312 = dma.done [#allocation9], 1024
        $region64: #{tpu_custom_call.1} parent=43 // pred_fallthru
          _
        // Predicated region
        $region65: #{tpu_custom_call.1} parent=43 // pred_check
          %p313 = pneg %p152
        $region66: #{tpu_custom_call.1} parent=43 // pred_check_branch
          %315 = sbr.rel (%p313) target = $region68
        $region67: #{tpu_custom_call.1} parent=43 // pred_region
          %316 = dma.done [#allocation12], 1024
        $region68: #{tpu_custom_call.1} parent=43 // pred_fallthru
          _
        %s317 = sand.u32 %s34, 1
        %s318 = scalar_lea.sflag [#allocation3], %s317
        %s319 = sand.u32 %s34, 1
        %s320 = smul.addr %s319, 8
        %s321 = scalar_lea.vmem [#allocation2], %s320
        %p322 = pneg %p47
        %p323 = pneg %p44
        %p324 = pneg %p68
        %p325 = pneg %p65
        %p326 = pneg %p89
        %p327 = pneg %p86
        %p328 = pneg %p110
        %p329 = pneg %p107
        %p330 = pneg %p131
        %p331 = pneg %p128
        %p332 = pneg %p152
        %p333 = pneg %p149
        %p334 = pneg %p178
        %p335 = pneg %p175
        %s336 = sand.u32 %s165, 1
        %s337 = scalar_lea.sflag [#allocation4], %s336
        %s338 = sand.u32 %s165, 1
        %s339 = smul.addr %s338, 16
        %s340 = scalar_lea.vmem [#allocation13], %s339
        %s341 = smul.u32 2, %s26
        %s342 = smul.u32 2, %s26
        %v344 = vld [vmem:[%s292] sm:$0xf]
        %v345 = vld [vmem:[%s292 + $0x4] sm:$0xf]
        %v346 = vld [vmem:[#allocation7] sm:$0xf]
        %v347 = vld [vmem:[#allocation7 + $0x4] sm:$0xf]
        %v348 = vld [vmem:[#allocation7 + $0x8] sm:$0xf]
        %v349 = vld [vmem:[#allocation7 + $0xc] sm:$0xf]
        %v350 = vld [vmem:[#allocation7 + $0x10] sm:$0xf]
        %v351 = vld [vmem:[#allocation7 + $0x14] sm:$0xf]
        %v352 = vld [vmem:[#allocation7 + $0x18] sm:$0xf]
        %v353 = vld [vmem:[#allocation7 + $0x1c] sm:$0xf]
        %v354 = vld [vmem:[#allocation7 + $0x20] sm:$0xf]
        %v355 = vld [vmem:[#allocation7 + $0x24] sm:$0xf]
        %v356 = vld [vmem:[#allocation7 + $0x28] sm:$0xf]
        %v357 = vld [vmem:[#allocation7 + $0x2c] sm:$0xf]
        %v358 = vld [vmem:[#allocation7 + $0x30] sm:$0xf]
        %v359 = vld [vmem:[#allocation7 + $0x34] sm:$0xf]
        %v360 = vld [vmem:[#allocation7 + $0x38] sm:$0xf]
        %v361 = vld [vmem:[#allocation7 + $0x3c] sm:$0xf]
        %v362 = vld [vmem:[#allocation5] sm:$0x1]
        %v363 = vlaneseq
        %v364 = vshrl.u32 %v363, 7
        %v365 = vsub.s32 0, %v364
        %v366 = vrot.slane %v362, %v365
        %v369 = vunpack.c.l.b16 %v344
        %v370 = vunpack.c.l.b16 %v345
        %v371 = vpack.c.b16 %v370, %v369
        %v389 = vunpack.c.l.b16 %v346
        %v390 = vunpack.c.l.b16 %v347
        %v391 = vunpack.c.l.b16 %v348
        %v392 = vunpack.c.l.b16 %v349
        %v393 = vunpack.c.l.b16 %v350
        %v394 = vunpack.c.l.b16 %v351
        %v395 = vunpack.c.l.b16 %v352
        %v396 = vunpack.c.l.b16 %v353
        %v397 = vunpack.c.l.b16 %v354
        %v398 = vunpack.c.l.b16 %v355
        %v399 = vunpack.c.l.b16 %v356
        %v400 = vunpack.c.l.b16 %v357
        %v401 = vunpack.c.l.b16 %v358
        %v402 = vunpack.c.l.b16 %v359
        %v403 = vunpack.c.l.b16 %v360
        %v404 = vunpack.c.l.b16 %v361
        %v405 = vpack.c.b16 %v390, %v389
        %v406 = vpack.c.b16 %v392, %v391
        %v407 = vpack.c.b16 %v394, %v393
        %v408 = vpack.c.b16 %v396, %v395
        %v409 = vpack.c.b16 %v398, %v397
        %v410 = vpack.c.b16 %v400, %v399
        %v411 = vpack.c.b16 %v402, %v401
        %v412 = vpack.c.b16 %v404, %v403
        %421 = vmatprep.subr.bf16.mxu0 0
        %422 = vmatpush1.bf16.msra.mxu0 %v412
        %423 = vmatprep.subr.bf16.mxu0 0
        %424 = vmatpush1.bf16.msra.mxu0 %v411
        %425 = vmatprep.subr.bf16.mxu0 0
        %426 = vmatpush1.bf16.msra.mxu0 %v410
        %427 = vmatprep.subr.bf16.mxu0 0
        %428 = vmatpush1.bf16.msra.mxu0 %v409
        %429 = vmatprep.subr.bf16.mxu0 0
        %430 = vmatpush1.bf16.msra.mxu0 %v408
        %431 = vmatprep.subr.bf16.mxu0 0
        %432 = vmatpush1.bf16.msra.mxu0 %v407
        %433 = vmatprep.subr.bf16.mxu0 0
        %434 = vmatpush1.bf16.msra.mxu0 %v406
        %435 = vmatprep.subr.bf16.mxu0 0
        %436 = vmatpush1.bf16.msra.mxu0 %v405
        %437 = vmatprep.subr.bf16.mxu0 0
        %438 = vmatpush2.bf16.msra.mxu0 0
        %439 = vmatprep.subr.bf16.mxu0 0
        %440 = vmatpush2.bf16.msra.mxu0 0
        %441 = vmatprep.subr.bf16.mxu0 0
        %442 = vmatpush2.bf16.msra.mxu0 0
        %443 = vmatprep.subr.bf16.mxu0 0
        %444 = vmatpush2.bf16.msra.mxu0 0
        %445 = vmatprep.subr.bf16.mxu0 0
        %446 = vmatpush2.bf16.msra.mxu0 0
        %447 = vmatprep.subr.bf16.mxu0 0
        %448 = vmatpush2.bf16.msra.mxu0 0
        %449 = vmatprep.subr.bf16.mxu0 0
        %450 = vmatpush2.bf16.msra.mxu0 0
        %451 = vmatprep.subr.bf16.mxu0 0
        %452 = vmatpush2.bf16.msra.mxu0 0
        %453 = vmatprep.mubr.bf16.mxu0 0
        %454 = vmatmul.mubr.bf16.gmra.mxu0 %v371
        %v455 = vpop.f32.mrf.mxu0
        %v456 = vadd.f32 %v366, %v455
        %v457 = vpop.f32.mrf.mxu0
        %v458 = vpop.f32.mrf.mxu0
        %v459 = vadd.f32 %v366, %v458
        %v460 = vpop.f32.mrf.mxu0
        %461 = vdwg.mxu0
        %v462 = vtanh.pop %v456
        %v463 = vtanh.pop %v459
        %v464 = vmax.f32 %v462, 0.0
        %v465 = vmax.f32 %v463, 0.0
        %v466 = vpack.c.bf16 %v465, %v464
        %v467 = vld [vmem:[#allocation8] sm:$0xf]
        %v468 = vld [vmem:[#allocation8 + $0x4] sm:$0xf]
        %v469 = vld [vmem:[#allocation8 + $0x8] sm:$0xf]
        %v470 = vld [vmem:[#allocation8 + $0xc] sm:$0xf]
        %v471 = vld [vmem:[#allocation8 + $0x10] sm:$0xf]
        %v472 = vld [vmem:[#allocation8 + $0x14] sm:$0xf]
        %v473 = vld [vmem:[#allocation8 + $0x18] sm:$0xf]
        %v474 = vld [vmem:[#allocation8 + $0x1c] sm:$0xf]
        %v475 = vld [vmem:[#allocation8 + $0x20] sm:$0xf]
        %v476 = vld [vmem:[#allocation8 + $0x24] sm:$0xf]
        %v477 = vld [vmem:[#allocation8 + $0x28] sm:$0xf]
        %v478 = vld [vmem:[#allocation8 + $0x2c] sm:$0xf]
        %v479 = vld [vmem:[#allocation8 + $0x30] sm:$0xf]
        %v480 = vld [vmem:[#allocation8 + $0x34] sm:$0xf]
        %v481 = vld [vmem:[#allocation8 + $0x38] sm:$0xf]
        %v482 = vld [vmem:[#allocation8 + $0x3c] sm:$0xf]
        %v483 = vld [vmem:[#allocation5 + $0x1] sm:$0x1]
        %v484 = vlaneseq
        %v485 = vshrl.u32 %v484, 7
        %v486 = vsub.s32 0, %v485
        %v487 = vrot.slane %v483, %v486
        %v504 = vunpack.c.l.b16 %v467
        %v505 = vunpack.c.l.b16 %v468
        %v506 = vunpack.c.l.b16 %v469
        %v507 = vunpack.c.l.b16 %v470
        %v508 = vunpack.c.l.b16 %v471
        %v509 = vunpack.c.l.b16 %v472
        %v510 = vunpack.c.l.b16 %v473
        %v511 = vunpack.c.l.b16 %v474
        %v512 = vunpack.c.l.b16 %v475
        %v513 = vunpack.c.l.b16 %v476
        %v514 = vunpack.c.l.b16 %v477
        %v515 = vunpack.c.l.b16 %v478
        %v516 = vunpack.c.l.b16 %v479
        %v517 = vunpack.c.l.b16 %v480
        %v518 = vunpack.c.l.b16 %v481
        %v519 = vunpack.c.l.b16 %v482
        %v520 = vpack.c.b16 %v505, %v504
        %v521 = vpack.c.b16 %v507, %v506
        %v522 = vpack.c.b16 %v509, %v508
        %v523 = vpack.c.b16 %v511, %v510
        %v524 = vpack.c.b16 %v513, %v512
        %v525 = vpack.c.b16 %v515, %v514
        %v526 = vpack.c.b16 %v517, %v516
        %v527 = vpack.c.b16 %v519, %v518
        %536 = vmatprep.subr.bf16.mxu0 0
        %537 = vmatpush1.bf16.msra.mxu0 %v527
        %538 = vmatprep.subr.bf16.mxu0 0
        %539 = vmatpush1.bf16.msra.mxu0 %v526
        %540 = vmatprep.subr.bf16.mxu0 0
        %541 = vmatpush1.bf16.msra.mxu0 %v525
        %542 = vmatprep.subr.bf16.mxu0 0
        %543 = vmatpush1.bf16.msra.mxu0 %v524
        %544 = vmatprep.subr.bf16.mxu0 0
        %545 = vmatpush1.bf16.msra.mxu0 %v523
        %546 = vmatprep.subr.bf16.mxu0 0
        %547 = vmatpush1.bf16.msra.mxu0 %v522
        %548 = vmatprep.subr.bf16.mxu0 0
        %549 = vmatpush1.bf16.msra.mxu0 %v521
        %550 = vmatprep.subr.bf16.mxu0 0
        %551 = vmatpush1.bf16.msra.mxu0 %v520
        %552 = vmatprep.subr.bf16.mxu0 0
        %553 = vmatpush2.bf16.msra.mxu0 0
        %554 = vmatprep.subr.bf16.mxu0 0
        %555 = vmatpush2.bf16.msra.mxu0 0
        %556 = vmatprep.subr.bf16.mxu0 0
        %557 = vmatpush2.bf16.msra.mxu0 0
        %558 = vmatprep.subr.bf16.mxu0 0
        %559 = vmatpush2.bf16.msra.mxu0 0
        %560 = vmatprep.subr.bf16.mxu0 0
        %561 = vmatpush2.bf16.msra.mxu0 0
        %562 = vmatprep.subr.bf16.mxu0 0
        %563 = vmatpush2.bf16.msra.mxu0 0
        %564 = vmatprep.subr.bf16.mxu0 0
        %565 = vmatpush2.bf16.msra.mxu0 0
        %566 = vmatprep.subr.bf16.mxu0 0
        %567 = vmatpush2.bf16.msra.mxu0 0
        %568 = vmatprep.mubr.bf16.mxu0 0
        %569 = vmatmul.mubr.bf16.gmra.mxu0 %v466
        %v570 = vpop.f32.mrf.mxu0
        %v571 = vadd.f32 %v487, %v570
        %v572 = vpop.f32.mrf.mxu0
        %v573 = vpop.f32.mrf.mxu0
        %v574 = vadd.f32 %v487, %v573
        %v575 = vpop.f32.mrf.mxu0
        %576 = vdwg.mxu0
        %v577 = vmax.f32 %v571, 0.0
        %v578 = vmax.f32 %v574, 0.0
        %v579 = vpack.c.bf16 %v578, %v577
        %v580 = vld [vmem:[#allocation10] sm:$0xf]
        %v581 = vld [vmem:[#allocation10 + $0x4] sm:$0xf]
        %v582 = vld [vmem:[#allocation10 + $0x8] sm:$0xf]
        %v583 = vld [vmem:[#allocation10 + $0xc] sm:$0xf]
        %v584 = vld [vmem:[#allocation10 + $0x10] sm:$0xf]
        %v585 = vld [vmem:[#allocation10 + $0x14] sm:$0xf]
        %v586 = vld [vmem:[#allocation10 + $0x18] sm:$0xf]
        %v587 = vld [vmem:[#allocation10 + $0x1c] sm:$0xf]
        %v588 = vld [vmem:[#allocation10 + $0x20] sm:$0xf]
        %v589 = vld [vmem:[#allocation10 + $0x24] sm:$0xf]
        %v590 = vld [vmem:[#allocation10 + $0x28] sm:$0xf]
        %v591 = vld [vmem:[#allocation10 + $0x2c] sm:$0xf]
        %v592 = vld [vmem:[#allocation10 + $0x30] sm:$0xf]
        %v593 = vld [vmem:[#allocation10 + $0x34] sm:$0xf]
        %v594 = vld [vmem:[#allocation10 + $0x38] sm:$0xf]
        %v595 = vld [vmem:[#allocation10 + $0x3c] sm:$0xf]
        %v596 = vld [vmem:[#allocation5 + $0x2] sm:$0x1]
        %v597 = vlaneseq
        %v598 = vshrl.u32 %v597, 7
        %v599 = vsub.s32 0, %v598
        %v600 = vrot.slane %v596, %v599
        %v617 = vunpack.c.l.b16 %v580
        %v618 = vunpack.c.l.b16 %v581
        %v619 = vunpack.c.l.b16 %v582
        %v620 = vunpack.c.l.b16 %v583
        %v621 = vunpack.c.l.b16 %v584
        %v622 = vunpack.c.l.b16 %v585
        %v623 = vunpack.c.l.b16 %v586
        %v624 = vunpack.c.l.b16 %v587
        %v625 = vunpack.c.l.b16 %v588
        %v626 = vunpack.c.l.b16 %v589
        %v627 = vunpack.c.l.b16 %v590
        %v628 = vunpack.c.l.b16 %v591
        %v629 = vunpack.c.l.b16 %v592
        %v630 = vunpack.c.l.b16 %v593
        %v631 = vunpack.c.l.b16 %v594
        %v632 = vunpack.c.l.b16 %v595
        %v633 = vpack.c.b16 %v618, %v617
        %v634 = vpack.c.b16 %v620, %v619
        %v635 = vpack.c.b16 %v622, %v621
        %v636 = vpack.c.b16 %v624, %v623
        %v637 = vpack.c.b16 %v626, %v625
        %v638 = vpack.c.b16 %v628, %v627
        %v639 = vpack.c.b16 %v630, %v629
        %v640 = vpack.c.b16 %v632, %v631
        %649 = vmatprep.subr.bf16.mxu0 0
        %650 = vmatpush1.bf16.msra.mxu0 %v640
        %651 = vmatprep.subr.bf16.mxu0 0
        %652 = vmatpush1.bf16.msra.mxu0 %v639
        %653 = vmatprep.subr.bf16.mxu0 0
        %654 = vmatpush1.bf16.msra.mxu0 %v638
        %655 = vmatprep.subr.bf16.mxu0 0
        %656 = vmatpush1.bf16.msra.mxu0 %v637
        %657 = vmatprep.subr.bf16.mxu0 0
        %658 = vmatpush1.bf16.msra.mxu0 %v636
        %659 = vmatprep.subr.bf16.mxu0 0
        %660 = vmatpush1.bf16.msra.mxu0 %v635
        %661 = vmatprep.subr.bf16.mxu0 0
        %662 = vmatpush1.bf16.msra.mxu0 %v634
        %663 = vmatprep.subr.bf16.mxu0 0
        %664 = vmatpush1.bf16.msra.mxu0 %v633
        %665 = vmatprep.subr.bf16.mxu0 0
        %666 = vmatpush2.bf16.msra.mxu0 0
        %667 = vmatprep.subr.bf16.mxu0 0
        %668 = vmatpush2.bf16.msra.mxu0 0
        %669 = vmatprep.subr.bf16.mxu0 0
        %670 = vmatpush2.bf16.msra.mxu0 0
        %671 = vmatprep.subr.bf16.mxu0 0
        %672 = vmatpush2.bf16.msra.mxu0 0
        %673 = vmatprep.subr.bf16.mxu0 0
        %674 = vmatpush2.bf16.msra.mxu0 0
        %675 = vmatprep.subr.bf16.mxu0 0
        %676 = vmatpush2.bf16.msra.mxu0 0
        %677 = vmatprep.subr.bf16.mxu0 0
        %678 = vmatpush2.bf16.msra.mxu0 0
        %679 = vmatprep.subr.bf16.mxu0 0
        %680 = vmatpush2.bf16.msra.mxu0 0
        %681 = vmatprep.mubr.bf16.mxu0 0
        %682 = vmatmul.mubr.bf16.gmra.mxu0 %v579
        %v683 = vpop.f32.mrf.mxu0
        %v684 = vadd.f32 %v600, %v683
        %v685 = vpop.f32.mrf.mxu0
        %v686 = vpop.f32.mrf.mxu0
        %v687 = vadd.f32 %v600, %v686
        %v688 = vpop.f32.mrf.mxu0
        %689 = vdwg.mxu0
        %v690 = vmax.f32 %v684, 0.0
        %v691 = vmax.f32 %v687, 0.0
        %v692 = vpack.c.bf16 %v691, %v690
        %v693 = vld [vmem:[#allocation11] sm:$0xf]
        %v694 = vld [vmem:[#allocation11 + $0x4] sm:$0xf]
        %v695 = vld [vmem:[#allocation11 + $0x8] sm:$0xf]
        %v696 = vld [vmem:[#allocation11 + $0xc] sm:$0xf]
        %v697 = vld [vmem:[#allocation11 + $0x10] sm:$0xf]
        %v698 = vld [vmem:[#allocation11 + $0x14] sm:$0xf]
        %v699 = vld [vmem:[#allocation11 + $0x18] sm:$0xf]
        %v700 = vld [vmem:[#allocation11 + $0x1c] sm:$0xf]
        %v701 = vld [vmem:[#allocation11 + $0x20] sm:$0xf]
        %v702 = vld [vmem:[#allocation11 + $0x24] sm:$0xf]
        %v703 = vld [vmem:[#allocation11 + $0x28] sm:$0xf]
        %v704 = vld [vmem:[#allocation11 + $0x2c] sm:$0xf]
        %v705 = vld [vmem:[#allocation11 + $0x30] sm:$0xf]
        %v706 = vld [vmem:[#allocation11 + $0x34] sm:$0xf]
        %v707 = vld [vmem:[#allocation11 + $0x38] sm:$0xf]
        %v708 = vld [vmem:[#allocation11 + $0x3c] sm:$0xf]
        %v709 = vld [vmem:[#allocation5 + $0x3] sm:$0x1]
        %v710 = vlaneseq
        %v711 = vshrl.u32 %v710, 7
        %v712 = vsub.s32 0, %v711
        %v713 = vrot.slane %v709, %v712
        %v730 = vunpack.c.l.b16 %v693
        %v731 = vunpack.c.l.b16 %v694
        %v732 = vunpack.c.l.b16 %v695
        %v733 = vunpack.c.l.b16 %v696
        %v734 = vunpack.c.l.b16 %v697
        %v735 = vunpack.c.l.b16 %v698
        %v736 = vunpack.c.l.b16 %v699
        %v737 = vunpack.c.l.b16 %v700
        %v738 = vunpack.c.l.b16 %v701
        %v739 = vunpack.c.l.b16 %v702
        %v740 = vunpack.c.l.b16 %v703
        %v741 = vunpack.c.l.b16 %v704
        %v742 = vunpack.c.l.b16 %v705
        %v743 = vunpack.c.l.b16 %v706
        %v744 = vunpack.c.l.b16 %v707
        %v745 = vunpack.c.l.b16 %v708
        %v746 = vpack.c.b16 %v731, %v730
        %v747 = vpack.c.b16 %v733, %v732
        %v748 = vpack.c.b16 %v735, %v734
        %v749 = vpack.c.b16 %v737, %v736
        %v750 = vpack.c.b16 %v739, %v738
        %v751 = vpack.c.b16 %v741, %v740
        %v752 = vpack.c.b16 %v743, %v742
        %v753 = vpack.c.b16 %v745, %v744
        %762 = vmatprep.subr.bf16.mxu0 0
        %763 = vmatpush1.bf16.msra.mxu0 %v753
        %764 = vmatprep.subr.bf16.mxu0 0
        %765 = vmatpush1.bf16.msra.mxu0 %v752
        %766 = vmatprep.subr.bf16.mxu0 0
        %767 = vmatpush1.bf16.msra.mxu0 %v751
        %768 = vmatprep.subr.bf16.mxu0 0
        %769 = vmatpush1.bf16.msra.mxu0 %v750
        %770 = vmatprep.subr.bf16.mxu0 0
        %771 = vmatpush1.bf16.msra.mxu0 %v749
        %772 = vmatprep.subr.bf16.mxu0 0
        %773 = vmatpush1.bf16.msra.mxu0 %v748
        %774 = vmatprep.subr.bf16.mxu0 0
        %775 = vmatpush1.bf16.msra.mxu0 %v747
        %776 = vmatprep.subr.bf16.mxu0 0
        %777 = vmatpush1.bf16.msra.mxu0 %v746
        %778 = vmatprep.subr.bf16.mxu0 0
        %779 = vmatpush2.bf16.msra.mxu0 0
        %780 = vmatprep.subr.bf16.mxu0 0
        %781 = vmatpush2.bf16.msra.mxu0 0
        %782 = vmatprep.subr.bf16.mxu0 0
        %783 = vmatpush2.bf16.msra.mxu0 0
        %784 = vmatprep.subr.bf16.mxu0 0
        %785 = vmatpush2.bf16.msra.mxu0 0
        %786 = vmatprep.subr.bf16.mxu0 0
        %787 = vmatpush2.bf16.msra.mxu0 0
        %788 = vmatprep.subr.bf16.mxu0 0
        %789 = vmatpush2.bf16.msra.mxu0 0
        %790 = vmatprep.subr.bf16.mxu0 0
        %791 = vmatpush2.bf16.msra.mxu0 0
        %792 = vmatprep.subr.bf16.mxu0 0
        %793 = vmatpush2.bf16.msra.mxu0 0
        %794 = vmatprep.mubr.bf16.mxu0 0
        %795 = vmatmul.mubr.bf16.gmra.mxu0 %v692
        %v796 = vpop.f32.mrf.mxu0
        %v797 = vadd.f32 %v713, %v796
        %v798 = vpop.f32.mrf.mxu0
        %v799 = vpop.f32.mrf.mxu0
        %v800 = vadd.f32 %v713, %v799
        %v801 = vpop.f32.mrf.mxu0
        %802 = vdwg.mxu0
        %v803 = vtanh.pop %v797
        %v804 = vtanh.pop %v800
        %805 = vst [vmem:[%s340] sm:$0xff] %v803
        %806 = vst [vmem:[%s340 + $0x8] sm:$0xff] %v804
        %s807 = sand.u32 %s165, 1
        %s808 = scalar_lea.sflag [#allocation4], %s807
        %s809 = sand.u32 %s165, 1
        %s810 = smul.addr %s809, 16
        %s811 = scalar_lea.vmem [#allocation13], %s810
        // Predicated region
        $region69: #{tpu_custom_call.1} parent=43 // pred_check
          %p812 = pneg %p175
        $region70: #{tpu_custom_call.1} parent=43 // pred_check_branch
          %814 = sbr.rel (%p812) target = $region72
        $region71: #{tpu_custom_call.1} parent=43 // pred_region
          %s815 = smul.u32 2, %s26
          %s817 = ssub.s32 256, 256
          %818 = vsyncadd %s808, %s817
          %s819 = smul.addr %s815, 128
          %s820 = scalar_lea.hbm %s6, %s819
          %s821 = sshll.u32 %s811, 4
          %s822 = int_to_ptr.vmem [resolvable:$true] %s821
          %827 = dma.vmem_to_hbm [thread:$0]  %s822, 256, %s820, %s808, 128, 128, 8
        $region72: #{tpu_custom_call.1} parent=43 // pred_fallthru
          _
      $region44: #{tpu_custom_call.1} parent=5 // pred_fallthru
        _
      %p828 = scmp.le.s32.totalorder 2, %s21
      // Predicated region
      $region73: #{tpu_custom_call.1} parent=5 // pred_check
        %p829 = pneg %p828
      $region74: #{tpu_custom_call.1} parent=5 // pred_check_branch
        %831 = sbr.rel (%p829) target = $region76
      $region75: #{tpu_custom_call.1} parent=5 // pred_region
        %s832 = ssub.s32 %s21, 2
        // Predicated region
        $region77: #{tpu_custom_call.1} parent=75 // pred_check
          %p833 = pneg %p181
        $region78: #{tpu_custom_call.1} parent=75 // pred_check_branch
          %835 = sbr.rel (%p833) target = $region80
        $region79: #{tpu_custom_call.1} parent=75 // pred_region
          %s836 = sand.u32 %s166, 1
          %s837 = scalar_lea.sflag [#allocation4], %s836
          %s838 = sand.u32 %s166, 1
          %s839 = smul.addr %s838, 16
          %s840 = scalar_lea.vmem [#allocation13], %s839
          %841 = dma.done %s837, 256
        $region80: #{tpu_custom_call.1} parent=75 // pred_fallthru
          _
      $region76: #{tpu_custom_call.1} parent=5 // pred_fallthru
        _
    $region6: #{tpu_custom_call.1} parent=1 // loop_footer
      %s25 = sadd.s32 1, %s21
    $region7: #{tpu_custom_call.1} parent=1 // loop_footer_branch
      %20 = sbr.rel target = $region3
    $region8: #{tpu_custom_call.1} parent=1 // loop_exit
      _
    %842 = vsyncpa [#allocation3], 1
    %s843 = scalar_lea.sflag [#allocation3], 1
    %844 = vsyncpa %s843, 1
    %845 = vsyncpa [#allocation6], 1
    %846 = vsyncpa [#allocation9], 1
    %847 = vsyncpa [#allocation12], 1
    %848 = vsyncpa [#allocation4], 1
    %s849 = scalar_lea.sflag [#allocation4], 1
    %850 = vsyncpa %s849, 1

</llo_original>
